<compile_context>
chip_gen: v6e
topology: v6e:2x2x1
jax: 0.10.0
libtpu: 0.0.40
codegen_flags: <defaults>
</compile_context>

<pallas_src>
import jax
import jax.numpy as jnp
from jax.experimental import pallas as pl
from jax.experimental.pallas import tpu as pltpu

# CartPole-like environment dims (env.observation_space.shape[0], env.action_space.n)
N_STATES = 4
N_ACTIONS = 2
HIDDEN = 10

LANES = 128
W2T_ROW = N_STATES                       # first row of transposed w2 (+ folded b2)
B1_ROW = N_STATES + N_ACTIONS            # row holding b1
PACKED_ROWS = 8                          # pad to 8 sublanes: one full f32 vreg tile


def _tree_sum(terms):
    """Pairwise tree-sum to break the serial VALU accumulation chain."""
    terms = list(terms)
    while len(terms) > 1:
        nxt = [terms[i] + terms[i + 1] for i in range(0, len(terms) - 1, 2)]
        if len(terms) % 2:
            nxt.append(terms[-1])
        terms = nxt
    return terms[0]


def _net_kernel(x_ref, p_ref, out_ref):
    x = x_ref[...]                       # (B, N_STATES) f32
    p = p_ref[...]                       # (PACKED_ROWS, LANES) f32

    # ---- fc1 (+ bias): N_STATES broadcast-FMAs, tree-summed (VPU only) ----
    terms = [p[B1_ROW:B1_ROW + 1, :]]
    for k in range(N_STATES):
        terms.append(x[:, k:k + 1] * p[k:k + 1, :])
    acc = _tree_sum(terms)               # (B, LANES)
    h = jnp.tanh(acc)                    # lanes >= HIDDEN are tanh(0) = 0

    # Inject the fc2-bias lane: h[:, HIDDEN] := 1 so the lane-reduce below also
    # adds b2[a] (stored at lane HIDDEN of each transposed-w2 row). One VPU select.
    lane = jax.lax.broadcasted_iota(jnp.int32, h.shape, 1)
    h = jnp.where(lane == HIDDEN, 1.0, h)

    # ---- fc2 (+ bias): per action, one VPU multiply + one cross-lane reduce ----
    # (replaces 10 single-lane-extract + broadcast relayouts per call)
    logits = [
        jnp.sum(h * p[W2T_ROW + a:W2T_ROW + a + 1, :], axis=-1, keepdims=True)
        for a in range(N_ACTIONS)
    ]                                    # each (B, 1)

    # ---- numerically stable softmax over the N_ACTIONS columns (exact divide) ----
    m = logits[0]
    for col in logits[1:]:
        m = jnp.maximum(m, col)
    es = [jnp.exp(col - m) for col in logits]
    denom = _tree_sum(es)
    probs = [e / denom for e in es]      # exact: rows sum to 1.0 to float rounding

    # ---- store (B, N_ACTIONS) directly: one tiny store, no wrapper-side slice ----
    out_lane = jax.lax.broadcasted_iota(jnp.int32, out_ref.shape, 1)
    out = probs[-1]
    for a in range(N_ACTIONS - 2, -1, -1):
        out = jnp.where(out_lane == a, probs[a], out)
    out_ref[...] = out


def pack_params(w1, b1, w2, b2):
    """Pack (w1, b1, w2^T + b2) into one (8, 128) f32 tile.

    Do this once per parameter update (not per forward call) so the kernel only
    sees two operands: x and the packed params.
    """
    w1 = jnp.asarray(w1, jnp.float32).reshape(N_STATES, HIDDEN)
    b1 = jnp.asarray(b1, jnp.float32).reshape(1, HIDDEN)
    w2 = jnp.asarray(w2, jnp.float32).reshape(HIDDEN, N_ACTIONS)
    b2 = jnp.asarray(b2, jnp.float32).reshape(1, N_ACTIONS)

    packed = jnp.zeros((PACKED_ROWS, LANES), jnp.float32)
    packed = packed.at[0:N_STATES, 0:HIDDEN].set(w1)                       # w1 rows
    packed = packed.at[W2T_ROW:W2T_ROW + N_ACTIONS, 0:HIDDEN].set(w2.T)    # w2 transposed
    packed = packed.at[W2T_ROW:W2T_ROW + N_ACTIONS, HIDDEN].set(b2[0])     # b2 folded in
    packed = packed.at[B1_ROW, 0:HIDDEN].set(b1[0])                        # b1
    return packed


@jax.jit
def net_forward(x, packed_params):
    """x: (B, N_STATES) f32; packed_params: (PACKED_ROWS, LANES) f32 from pack_params."""
    B = x.shape[0]
    vmem = pl.BlockSpec(memory_space=pltpu.MemorySpace.VMEM)
    return pl.pallas_call(
        _net_kernel,
        out_shape=jax.ShapeDtypeStruct((B, N_ACTIONS), jnp.float32),
        in_specs=[vmem, vmem],
        out_specs=vmem,
    )(x, packed_params)
    # TODO(synk): for large training batches add a 1-D grid over B
    # (tile ~1K-4K rows to respect v7x's 64 MiB VMEM, dimension_semantics=("parallel",)
    # so v7x's 2 TensorCores split the batch) — pure overhead at B=8.
    # TODO(synk): on v7x, A/B-test an MXU path for fc1 (pad x to 128 lanes, one
    # jnp.dot against a zero-padded w1) vs the 4 broadcast-FMAs; keep VPU on v5e/v6e.


def init_params(key):
    """Deterministic init mirroring Net.__init__:
       weights ~ Normal(0, 0.3); biases use the default nn.Linear uniform init."""
    k1, k2, k3, k4 = jax.random.split(key, 4)
    # stored as (in, out) so the kernel computes x @ W (same math as nn.Linear)
    w1 = 0.3 * jax.random.normal(k1, (N_STATES, HIDDEN), dtype=jnp.float32)
    w2 = 0.3 * jax.random.normal(k2, (HIDDEN, N_ACTIONS), dtype=jnp.float32)
    bound1 = 1.0 / jnp.sqrt(jnp.float32(N_STATES))
    bound2 = 1.0 / jnp.sqrt(jnp.float32(HIDDEN))
    b1 = jax.random.uniform(k3, (1, HIDDEN), minval=-bound1, maxval=bound1,
                            dtype=jnp.float32)
    b2 = jax.random.uniform(k4, (1, N_ACTIONS), minval=-bound2, maxval=bound2,
                            dtype=jnp.float32)
    return w1, b1, w2, b2


def _reference_forward(x, w1, b1, w2, b2):
    h = jnp.tanh(x @ w1 + b1)
    logits = h @ w2 + b2
    return jax.nn.softmax(logits, axis=-1)


if __name__ == "__main__":
    key = jax.random.PRNGKey(0)
    pkey, xkey = jax.random.split(key)

    w1, b1, w2, b2 = init_params(pkey)
    packed = pack_params(w1, b1, w2, b2)

    B = 8
    x = jax.random.normal(xkey, (B, N_STATES), dtype=jnp.float32)

    act_prob = jax.block_until_ready(net_forward(x, packed))

    # sanity: shape, rows of a softmax sum to 1, and matches a pure-JAX reference
    assert act_prob.shape == (B, N_ACTIONS)
    assert jnp.allclose(jnp.sum(act_prob, axis=-1), 1.0, atol=1e-4)
    ref = _reference_forward(x, w1, b1, w2, b2)
    assert jnp.allclose(act_prob, ref, atol=1e-3), (act_prob, ref)

    print("KERNEL_OK")
</pallas_src>

<mosaic_0001>
module attributes {stable_mosaic.version = 11 : i64} {
  func.func @_net_kernel(%arg0: memref<8x4xf32, #tpu.memory_space<vmem>>, %arg1: memref<8x128xf32, #tpu.memory_space<vmem>>, %arg2: memref<8x2xf32, #tpu.memory_space<vmem>>) attributes {dimension_semantics = [], scalar_prefetch = 0 : i64, scratch_operands = 0 : i64, tpu.core_type = #tpu.core_type<tc>} {
    %c0 = arith.constant 0 : index
    %c0_0 = arith.constant 0 : index
    %0 = vector.load %arg0[%c0, %c0_0] : memref<8x4xf32, #tpu.memory_space<vmem>>, vector<8x4xf32>
    %c0_1 = arith.constant 0 : index
    %c0_2 = arith.constant 0 : index
    %1 = vector.load %arg1[%c0_1, %c0_2] : memref<8x128xf32, #tpu.memory_space<vmem>>, vector<8x128xf32>
    %2 = vector.extract_strided_slice %1 {offsets = [6, 0], sizes = [1, 128], strides = [1, 1]} : vector<8x128xf32> to vector<1x128xf32>
    %3 = vector.extract_strided_slice %0 {offsets = [0, 0], sizes = [8, 1], strides = [1, 1]} : vector<8x4xf32> to vector<8x1xf32>
    %4 = vector.extract_strided_slice %1 {offsets = [0, 0], sizes = [1, 128], strides = [1, 1]} : vector<8x128xf32> to vector<1x128xf32>
    %5 = vector.broadcast %3 : vector<8x1xf32> to vector<8x128xf32>
    %6 = vector.broadcast %4 : vector<1x128xf32> to vector<8x128xf32>
    %7 = arith.mulf %5, %6 : vector<8x128xf32>
    %8 = vector.extract_strided_slice %0 {offsets = [0, 1], sizes = [8, 1], strides = [1, 1]} : vector<8x4xf32> to vector<8x1xf32>
    %9 = vector.extract_strided_slice %1 {offsets = [1, 0], sizes = [1, 128], strides = [1, 1]} : vector<8x128xf32> to vector<1x128xf32>
    %10 = vector.broadcast %8 : vector<8x1xf32> to vector<8x128xf32>
    %11 = vector.broadcast %9 : vector<1x128xf32> to vector<8x128xf32>
    %12 = arith.mulf %10, %11 : vector<8x128xf32>
    %13 = vector.extract_strided_slice %0 {offsets = [0, 2], sizes = [8, 1], strides = [1, 1]} : vector<8x4xf32> to vector<8x1xf32>
    %14 = vector.extract_strided_slice %1 {offsets = [2, 0], sizes = [1, 128], strides = [1, 1]} : vector<8x128xf32> to vector<1x128xf32>
    %15 = vector.broadcast %13 : vector<8x1xf32> to vector<8x128xf32>
    %16 = vector.broadcast %14 : vector<1x128xf32> to vector<8x128xf32>
    %17 = arith.mulf %15, %16 : vector<8x128xf32>
    %18 = vector.extract_strided_slice %0 {offsets = [0, 3], sizes = [8, 1], strides = [1, 1]} : vector<8x4xf32> to vector<8x1xf32>
    %19 = vector.extract_strided_slice %1 {offsets = [3, 0], sizes = [1, 128], strides = [1, 1]} : vector<8x128xf32> to vector<1x128xf32>
    %20 = vector.broadcast %18 : vector<8x1xf32> to vector<8x128xf32>
    %21 = vector.broadcast %19 : vector<1x128xf32> to vector<8x128xf32>
    %22 = arith.mulf %20, %21 : vector<8x128xf32>
    %23 = vector.broadcast %2 : vector<1x128xf32> to vector<8x128xf32>
    %24 = arith.addf %23, %7 : vector<8x128xf32>
    %25 = arith.addf %12, %17 : vector<8x128xf32>
    %26 = arith.addf %24, %25 : vector<8x128xf32>
    %27 = arith.addf %26, %22 : vector<8x128xf32>
    %28 = math.tanh %27 : vector<8x128xf32>
    %29 = tpu.iota {dimensions = array<i32: 1>} : vector<8x128xi32>
    %c10_i32 = arith.constant 10 : i32
    %30 = vector.broadcast %c10_i32 : i32 to vector<8x128xi32>
    %31 = arith.cmpi eq, %29, %30 : vector<8x128xi32>
    %cst = arith.constant 1.000000e+00 : f32
    %32 = vector.broadcast %cst : f32 to vector<8x128xf32>
    %33 = arith.select %31, %32, %28 : vector<8x128xi1>, vector<8x128xf32>
    %34 = vector.extract_strided_slice %1 {offsets = [4, 0], sizes = [1, 128], strides = [1, 1]} : vector<8x128xf32> to vector<1x128xf32>
    %35 = vector.broadcast %34 : vector<1x128xf32> to vector<8x128xf32>
    %36 = arith.mulf %33, %35 : vector<8x128xf32>
    %cst_3 = arith.constant dense<0.000000e+00> : vector<8xf32>
    %37 = vector.multi_reduction <add>, %36, %cst_3 [1] : vector<8x128xf32> to vector<8xf32>
    %38 = vector.shape_cast %37 : vector<8xf32> to vector<8x1xf32>
    %39 = vector.extract_strided_slice %1 {offsets = [5, 0], sizes = [1, 128], strides = [1, 1]} : vector<8x128xf32> to vector<1x128xf32>
    %40 = vector.broadcast %39 : vector<1x128xf32> to vector<8x128xf32>
    %41 = arith.mulf %33, %40 : vector<8x128xf32>
    %cst_4 = arith.constant dense<0.000000e+00> : vector<8xf32>
    %42 = vector.multi_reduction <add>, %41, %cst_4 [1] : vector<8x128xf32> to vector<8xf32>
    %43 = vector.shape_cast %42 : vector<8xf32> to vector<8x1xf32>
    %44 = arith.maximumf %38, %43 : vector<8x1xf32>
    %45 = arith.subf %38, %44 : vector<8x1xf32>
    %46 = math.exp %45 : vector<8x1xf32>
    %47 = arith.subf %43, %44 : vector<8x1xf32>
    %48 = math.exp %47 : vector<8x1xf32>
    %49 = arith.addf %46, %48 : vector<8x1xf32>
    %50 = arith.divf %46, %49 : vector<8x1xf32>
    %51 = arith.divf %48, %49 : vector<8x1xf32>
    %52 = tpu.iota {dimensions = array<i32: 1>} : vector<8x2xi32>
    %c0_i32 = arith.constant 0 : i32
    %53 = vector.broadcast %c0_i32 : i32 to vector<8x2xi32>
    %54 = arith.cmpi eq, %52, %53 : vector<8x2xi32>
    %55 = vector.shape_cast %50 : vector<8x1xf32> to vector<8x1xf32>
    %56 = vector.broadcast %55 : vector<8x1xf32> to vector<8x2xf32>
    %57 = vector.shape_cast %51 : vector<8x1xf32> to vector<8x1xf32>
    %58 = vector.broadcast %57 : vector<8x1xf32> to vector<8x2xf32>
    %59 = arith.select %54, %56, %58 : vector<8x2xi1>, vector<8x2xf32>
    %c0_5 = arith.constant 0 : index
    %c0_6 = arith.constant 0 : index
    %60 = vector.load %arg2[%c0_5, %c0_6] : memref<8x2xf32, #tpu.memory_space<vmem>>, vector<8x2xf32>
    tpu.vector_store %arg2[%c0_5, %c0_6], %59 {strides = array<i32>} : memref<8x2xf32, #tpu.memory_space<vmem>>, vector<8x2xf32>,
    return
  }
}

</mosaic_0001>

<llo_original>
// kernel: net_forward.1
$region0: #{net_forward.1}
  #allocation0 [shape = 'u32[]', space=smem, size = 0x4, offset = 0x4, fixed_abs, tag = 'smem constant byte address 0x4 - core index']
  #allocation1 [shape = 'u32[144,128]{1,0:T(1,128)}', space=vmem, size = 0x12000, scoped, tag = 'internal scratch']
  %s0 = inlined_call_operand.vmem [shape: f32[8,4], index: 0, kind: input, shape index: {}]
  %s1 = inlined_call_operand.vmem [shape: f32[8,128], index: 1, kind: input, shape index: {}]
  %s2 = inlined_call_operand.vmem [shape: f32[8,2], index: 2, kind: output, shape index: {}]
  %s3 = sld [smem:[#allocation0]]
  $region18: #{net_forward.1} parent=0
    _
  %s5 = ssub.s32 1, %s3
  %s6 = scalar_select 0, %s5, %s3
  // Predicated region
  $region2: #{net_forward.1} parent=0 // pred_check
    _
  $region3: #{net_forward.1} parent=0 // pred_check_branch
    %8 = sbr.rel (0) target = $region5
  $region4: #{net_forward.1} parent=0 // pred_region
    _
  $region5: #{net_forward.1} parent=0 // pred_fallthru
    _
  // Predicated region
  $region6: #{net_forward.1} parent=0 // pred_check
    _
  $region7: #{net_forward.1} parent=0 // pred_check_branch
    %10 = sbr.rel (0) target = $region9
  $region8: #{net_forward.1} parent=0 // pred_region
    _
  $region9: #{net_forward.1} parent=0 // pred_fallthru
    _
  %v11 = vld [vmem:[%s0] sm:$0xff]
  %v12 = vld [vmem:[%s1] sm:$0xff]
  %14 = vset.pattern.permute.xlu0 0
  %15 = vperm.xlu0 %14, %v11
  %v16 = vpop.permute.xlu0 %15
  %v18 = vlaneseq
  %v19 = vshrl.u32 %v18, 7
  %v20 = vsub.s32 0, %v19
  %v21 = vrot.slane %v12, %v20
  %v22 = vmul.f32 %v16, %v21
  %23 = vset.pattern.permute.xlu0 1
  %24 = vperm.xlu0 %23, %v11
  %v25 = vpop.permute.xlu0 %24
  %v27 = vlaneseq
  %v28 = vshrl.u32 %v27, 7
  %v29 = vsub.s32 1, %v28
  %v30 = vrot.slane %v12, %v29
  %v31 = vmul.f32 %v25, %v30
  %32 = vset.pattern.permute.xlu0 2
  %33 = vperm.xlu0 %32, %v11
  %v34 = vpop.permute.xlu0 %33
  %v36 = vlaneseq
  %v37 = vshrl.u32 %v36, 7
  %v38 = vsub.s32 2, %v37
  %v39 = vrot.slane %v12, %v38
  %v40 = vmul.f32 %v34, %v39
  %41 = vset.pattern.permute.xlu0 3
  %42 = vperm.xlu0 %41, %v11
  %v43 = vpop.permute.xlu0 %42
  %v45 = vlaneseq
  %v46 = vshrl.u32 %v45, 7
  %v47 = vsub.s32 3, %v46
  %v48 = vrot.slane %v12, %v47
  %v49 = vmul.f32 %v43, %v48
  %v50 = vlaneseq
  %v51 = vshrl.u32 %v50, 7
  %v52 = vsub.s32 6, %v51
  %v53 = vrot.slane %v12, %v52
  %v54 = vadd.f32 %v53, %v22
  %v55 = vadd.f32 %v31, %v40
  %v56 = vadd.f32 %v54, %v55
  %v57 = vadd.f32 %v56, %v49
  %v58 = vtanh.pop %v57
  %v59 = vlaneseq
  %v60 = vand.u32 %v59, 127
  %vm61 = vcmp.eq.s32.totalorder %v60, 10
  %v62 = vsel %vm61, 1.0, %v58
  %v63 = vlaneseq
  %v64 = vshrl.u32 %v63, 7
  %v65 = vsub.s32 4, %v64
  %v66 = vrot.slane %v12, %v65
  %v67 = vmul.f32 %v62, %v66
  %68 = vadd.xlane.f32.xlu0 %v67
  %v69 = vpop.xlane.xlu0 %68
  %v70 = vlaneseq
  %v71 = vshrl.u32 %v70, 7
  %v72 = vsub.s32 5, %v71
  %v73 = vrot.slane %v12, %v72
  %v74 = vmul.f32 %v62, %v73
  %75 = vadd.xlane.f32.xlu0 %v74
  %v76 = vpop.xlane.xlu0 %75
  %v77 = vmax.f32 %v69, %v76
  %v78 = vsub.f32 %v69, %v77
  %v79 = vmul.f32 %v78, 1.442695
  %v80 = vpow.pop %v79
  %v81 = vsub.f32 %v76, %v77
  %v82 = vmul.f32 %v81, 1.442695
  %v83 = vpow.pop %v82
  %v84 = vadd.f32 %v80, %v83
  %v85 = vrcp.pop %v84
  %v86 = vmul.f32 %v80, %v85
  %v87 = vmul.f32 %v83, %v85
  %vm88 = vcmp.eq.s32.totalorder %v60, 0
  %v89 = vsel %vm88, %v86, %v87
  %vm90 = vcmask 15360
  %91 = vst.msk [vmem:[%s2] sm:$0xff] %vm90, %v89
  // Predicated region
  $region10: #{net_forward.1} parent=0 // pred_check
    _
  $region11: #{net_forward.1} parent=0 // pred_check_branch
    %93 = sbr.rel (0) target = $region13
  $region12: #{net_forward.1} parent=0 // pred_region
    _
  $region13: #{net_forward.1} parent=0 // pred_fallthru
    _
  // Predicated region
  $region14: #{net_forward.1} parent=0 // pred_check
    _
  $region15: #{net_forward.1} parent=0 // pred_check_branch
    %95 = sbr.rel (0) target = $region17
  $region16: #{net_forward.1} parent=0 // pred_region
    _
  $region17: #{net_forward.1} parent=0 // pred_fallthru
    _

</llo_original>
